<compile_context>
chip_gen: v5e
topology: v5e:2x2
jax: 0.10.0
libtpu: 0.0.40
codegen_flags: <defaults>
</compile_context>

<pallas_src>
import jax
import jax.numpy as jnp
from jax.experimental import pallas as pl
from jax.experimental.pallas import tpu as pltpu

# ----------------------------- config ---------------------------------------
NUM_NODES = 16          # |graph.nodes()|
NUM_IDENTIFIERS = 8     # len(identifiers)  (== feature / label dimension)
STEP_DIM = 32           # args.step_dimensions
COMBINED_DIM = 32       # args.combined_dimensions
LANE_W = 16             # common lane width for all small operands (== NUM_NODES)
C_PAD = 128             # lane-dense output slab width
DTYPE = jnp.float32

# packed constant slab layout (rows, width LANE_W)
ROW_ADJ = 0                         # adjacency                    (16, 16)
ROW_FEAT = ROW_ADJ + NUM_NODES      # features, lanes >= 8 zero    (16, 16)
ROW_TRI = ROW_FEAT + NUM_NODES      # prefix-sum triangle (i<=j)   (16, 16)
ROW_LABELS = ROW_TRI + LANE_W       # node labels as f32           (1, 16)
ROW_ATTN = ROW_LABELS + 1           # attention, lanes >= 8 zero   (1, 16)
SLAB_ROWS = ROW_ATTN + 1            # = 50

# packed weight slab layout (rows, width C_PAD)
#   rows 0..7  : W23 = theta2 @ theta3_bot   (cols >= 32 zero)
#   rows 8..15 : zero
#   row  16    : bias = (attention @ theta1) @ theta3_top
W_ROWS = LANE_W + 1

# output lane layout of the (T, B, 128) slab
LANE_SCORE = COMBINED_DIM           # 32
LANE_NODE = COMBINED_DIM + 1        # 33
LANE_LABEL = COMBINED_DIM + 2       # 34


# ------------------------- fused walk kernel ---------------------------------
def _walk_kernel(const_ref, w_ref, nodes0_ref, uni_ref, out_ref):
    batch = nodes0_ref.shape[0]          # 8 rows per batch block (grid axis)
    num_steps = uni_ref.shape[0]

    # resident constants: static slices of the two packed slabs (no extra DMAs)
    adj = const_ref[ROW_ADJ:ROW_ADJ + NUM_NODES, :]          # (16, 16)
    feat = const_ref[ROW_FEAT:ROW_FEAT + NUM_NODES, :]       # (16, 16)
    tri = const_ref[ROW_TRI:ROW_TRI + LANE_W, :]             # (16, 16)
    labels_row = const_ref[ROW_LABELS:ROW_LABELS + 1, :]     # (1, 16)
    attn_row = const_ref[ROW_ATTN:ROW_ATTN + 1, :]           # (1, 16)
    w23 = w_ref[0:LANE_W, :]                                 # (16, 128)
    bias = w_ref[LANE_W:LANE_W + 1, :]                       # (1, 128)

    # hoisted per-call constants (built once per walk, not per step)
    lane16 = jax.lax.broadcasted_iota(jnp.int32, (batch, LANE_W), 1).astype(DTYPE)
    lane_out = jax.lax.broadcasted_iota(jnp.int32, (1, C_PAD), 1)
    msk_score = (lane_out == LANE_SCORE).astype(DTYPE)
    msk_node = (lane_out == LANE_NODE).astype(DTYPE)
    msk_label = (lane_out == LANE_LABEL).astype(DTYPE)

    def step(s, nodes_f):
        u = uni_ref[s]                                       # (B, 2) uniforms
        u_label = u[:, 0:1]
        u_pick = u[:, 1:2]

        # adjacency-row gather on the MXU: neighbor_vector = onehot(node) @ A
        node_oh = (lane16 == nodes_f).astype(DTYPE)                        # (B,16)
        nv = jnp.dot(node_oh, adj, preferred_element_type=jnp.float32)     # (B,16)
        nf = jnp.dot(nv, feat, preferred_element_type=jnp.float32)         # (B,16)
        spread = attn_row * nf                      # attention_spread     (B,16)

        # inverse-CDF categorical draw; normalization cancels (thr scales by total)
        csum = jnp.dot(spread, tri, preferred_element_type=jnp.float32)    # (B,16)
        thr = u_label * csum[:, LANE_W - 1:LANE_W]
        label_f = jnp.sum((csum < thr).astype(DTYPE), axis=-1, keepdims=True)
        onehot = (lane16 == label_f).astype(DTYPE)                         # (B,16)
        score = jnp.sum(onehot * attn_row, axis=-1, keepdims=True)         # (B,1)

        # uniform random choice among neighbors carrying the drawn label
        neigh = (nv > 0.5).astype(DTYPE)
        cand = neigh * (labels_row == label_f).astype(DTYPE)
        has = jnp.sum(cand, axis=-1, keepdims=True) > 0.5
        pool = jnp.where(has, cand, neigh)          # fallback: all neighbors
        prefix = jnp.dot(pool, tri, preferred_element_type=jnp.float32)    # (B,16)
        count = prefix[:, LANE_W - 1:LANE_W]
        kth = jnp.floor(u_pick * count)
        sel = ((prefix == kth + 1.0) & (pool > 0.5)).astype(DTYPE)
        new_nodes_f = jnp.sum(lane16 * sel, axis=-1, keepdims=True)        # (B,1)

        # state = onehot(label) @ (theta2 @ t3_bot) + (attn @ theta1) @ t3_top
        hn = jnp.dot(onehot, w23, preferred_element_type=jnp.float32)      # (B,128)
        out_ref[s] = (hn + bias
                      + score * msk_score
                      + new_nodes_f * msk_node
                      + label_f * msk_label).astype(out_ref.dtype)
        return new_nodes_f

    jax.lax.fori_loop(0, num_steps, step, nodes0_ref[...], unroll=True)


@jax.jit
def _walk_call(const_slab, w_slab, nodes0, uniforms):
    num_steps, b_pad, _ = uniforms.shape
    nb = b_pad // 8
    out = pl.pallas_call(
        _walk_kernel,
        out_shape=jax.ShapeDtypeStruct((num_steps, b_pad, C_PAD), DTYPE),
        grid=(nb,),
        in_specs=[
            pl.BlockSpec((SLAB_ROWS, LANE_W), lambda b: (0, 0)),      # constants
            pl.BlockSpec((W_ROWS, C_PAD), lambda b: (0, 0)),          # weights
            pl.BlockSpec((8, 1), lambda b: (b, 0)),                   # start nodes
            pl.BlockSpec((num_steps, 8, 2), lambda b: (0, b, 0)),     # uniforms
        ],
        out_specs=pl.BlockSpec((num_steps, 8, C_PAD), lambda b: (0, b, 0)),
        compiler_params=pltpu.CompilerParams(
            dimension_semantics=("parallel",)),
    )(const_slab, w_slab, nodes0, uniforms)
    states = out[..., :COMBINED_DIM]
    scores = out[..., LANE_SCORE]
    new_nodes = jnp.round(out[..., LANE_NODE]).astype(jnp.int32)
    labels = jnp.round(out[..., LANE_LABEL]).astype(jnp.int32)
    return states, new_nodes, scores, labels


# ------------------------------- module -------------------------------------
class StepNetworkLayerPallas:
    def __init__(self, key):
        k1, k2, k3 = jax.random.split(key, 3)
        # setup_attention: uniform attention over identifiers
        self.attention = jnp.ones((NUM_IDENTIFIERS,), DTYPE) / NUM_IDENTIFIERS
        # create_parameters: uniform_(-1, 1)
        self.theta_step_1 = jax.random.uniform(
            k1, (NUM_IDENTIFIERS, STEP_DIM), DTYPE, -1.0, 1.0)
        self.theta_step_2 = jax.random.uniform(
            k2, (NUM_IDENTIFIERS, STEP_DIM), DTYPE, -1.0, 1.0)
        self.theta_step_3 = jax.random.uniform(
            k3, (2 * STEP_DIM, COMBINED_DIM), DTYPE, -1.0, 1.0)
        t3_top = self.theta_step_3[:STEP_DIM]
        t3_bot = self.theta_step_3[STEP_DIM:]
        # data-independent attention branch (hoisted out of the kernel)
        self.bias = (self.attention.reshape(1, -1) @ self.theta_step_1) @ t3_top
        # label-branch weights fused: onehot @ (theta2 @ t3_bot) == theta2[label] @ t3_bot
        self.w23 = self.theta_step_2 @ t3_bot                       # (8, 32)
        w_slab = jnp.zeros((W_ROWS, C_PAD), DTYPE)
        w_slab = w_slab.at[:NUM_IDENTIFIERS, :COMBINED_DIM].set(self.w23)
        w_slab = w_slab.at[LANE_W, :COMBINED_DIM].set(self.bias[0])
        self.w_slab = w_slab

    def _const_slab(self, adjacency, node_labels, features):
        slab = jnp.zeros((SLAB_ROWS, LANE_W), DTYPE)
        slab = slab.at[ROW_ADJ:ROW_ADJ + NUM_NODES, :NUM_NODES].set(
            adjacency.astype(DTYPE))
        slab = slab.at[ROW_FEAT:ROW_FEAT + NUM_NODES, :NUM_IDENTIFIERS].set(
            features.astype(DTYPE))
        tri = (jnp.arange(LANE_W)[:, None] <= jnp.arange(LANE_W)[None, :]).astype(DTYPE)
        slab = slab.at[ROW_TRI:ROW_TRI + LANE_W, :].set(tri)
        slab = slab.at[ROW_LABELS, :NUM_NODES].set(node_labels.astype(DTYPE))
        slab = slab.at[ROW_ATTN, :NUM_IDENTIFIERS].set(self.attention)
        return slab

    # ---- fused multi-step, multi-walk forward: ONE pallas_call per walk ------
    def forward_walk(self, key, adjacency, node_labels, features, start_nodes,
                     num_steps):
        start_nodes = jnp.asarray(start_nodes, jnp.int32)
        b = int(start_nodes.shape[0])
        b_pad = ((b + 7) // 8) * 8                       # f32 sublane multiple
        nodes0 = jnp.zeros((b_pad, 1), DTYPE).at[:b, 0].set(start_nodes.astype(DTYPE))
        uniforms = jax.random.uniform(key, (num_steps, b_pad, 2), DTYPE)
        const_slab = self._const_slab(adjacency, node_labels, features)
        states, new_nodes, scores, labels = _walk_call(
            const_slab, self.w_slab, nodes0, uniforms)
        return states[:, :b, :], new_nodes[:, :b], scores[:, :b], labels[:, :b]

    # ---- single-step forward (reference interface) ---------------------------
    def forward(self, key, adjacency, node_labels, features, node):
        states, new_nodes, scores, _ = self.forward_walk(
            key, adjacency, node_labels, features,
            jnp.array([node], jnp.int32), num_steps=1)
        state = states[0, 0].reshape(1, 1, COMBINED_DIM)   # .view(1, 1, combined_dim)
        return state, new_nodes[0, 0], scores[0, 0]


# ------------------------------- main ----------------------------------------
if __name__ == "__main__":
    key = jax.random.PRNGKey(0)
    k_adj, k_feat, k_lab, k_model, k_step, k_walk = jax.random.split(key, 6)

    # synthetic undirected graph: symmetric 0/1 adjacency, no self loops
    upper = (jax.random.uniform(k_adj, (NUM_NODES, NUM_NODES)) > 0.5).astype(jnp.int32)
    adjacency = jnp.triu(upper, 1)
    adjacency = adjacency + adjacency.T
    adjacency = adjacency.at[0, 1].set(1).at[1, 0].set(1)   # node 0 has a neighbor

    # node features (num_nodes, num_identifiers), strictly positive
    features = jax.random.uniform(k_feat, (NUM_NODES, NUM_IDENTIFIERS), DTYPE, 0.1, 1.0)
    # per-node label assignments (stand-in for data['inverse_labels'])
    node_labels = jax.random.randint(k_lab, (NUM_NODES,), 0, NUM_IDENTIFIERS)

    layer = StepNetworkLayerPallas(k_model)

    # single-step forward, matching the PyTorch module's interface
    state, new_node, attention_score = layer.forward(
        k_step, adjacency, node_labels, features, node=0)
    state = jax.block_until_ready(state)
    assert state.shape == (1, 1, COMBINED_DIM) and state.dtype == DTYPE
    assert bool(jnp.isfinite(state).all())
    assert abs(float(attention_score) - 1.0 / NUM_IDENTIFIERS) < 1e-6
    assert 0 <= int(new_node) < NUM_NODES

    # fused multi-step batched walk: 8 walks x 4 steps in ONE kernel launch
    start = jnp.arange(8, dtype=jnp.int32) % NUM_NODES
    states, nodes_t, scores, labels = layer.forward_walk(
        k_walk, adjacency, node_labels, features, start, num_steps=4)
    states = jax.block_until_ready(states)
    assert states.shape == (4, 8, COMBINED_DIM)
    assert bool(jnp.isfinite(states).all())
    assert bool(((labels >= 0) & (labels < NUM_IDENTIFIERS)).all())
    assert bool(((nodes_t >= 0) & (nodes_t < NUM_NODES)).all())
    assert bool(jnp.allclose(scores, 1.0 / NUM_IDENTIFIERS))

    # state cross-check vs. the (re-associated) reference formula; loose tol in
    # case the MXU uses reduced-precision passes for f32 operands.
    ref = layer.bias + layer.w23[labels]
    assert bool(jnp.allclose(states, ref, atol=5e-2, rtol=5e-2))

    print("KERNEL_OK")
</pallas_src>

<mosaic_0001>
module attributes {stable_mosaic.version = 11 : i64} {
  func.func @_walk_kernel(%arg0: i32, %arg1: memref<50x16xf32, #tpu.memory_space<vmem>>, %arg2: memref<17x128xf32, #tpu.memory_space<vmem>>, %arg3: memref<8x1xf32, #tpu.memory_space<vmem>>, %arg4: memref<1x8x2xf32, #tpu.memory_space<vmem>>, %arg5: memref<1x8x128xf32, #tpu.memory_space<vmem>>) attributes {dimension_semantics = [#tpu.dimension_semantics<parallel>], iteration_bounds = array<i64: 1>, scalar_prefetch = 0 : i64, scratch_operands = 0 : i64, tpu.core_type = #tpu.core_type<tc>, window_params = [{pipeline_mode = #tpu.pipeline_mode<synchronous>, transform_indices = @transform_0, window_bounds = array<i64: 50, 16>}, {pipeline_mode = #tpu.pipeline_mode<synchronous>, transform_indices = @transform_1, window_bounds = array<i64: 17, 128>}, {transform_indices = @transform_2, window_bounds = array<i64: 8, 1>}, {transform_indices = @transform_3, window_bounds = array<i64: 1, 8, 2>}, {transform_indices = @transform_4, window_bounds = array<i64: 1, 8, 128>}]} {
    %c0 = arith.constant 0 : index
    %c0_0 = arith.constant 0 : index
    %0 = vector.load %arg1[%c0, %c0_0] : memref<50x16xf32, #tpu.memory_space<vmem>>, vector<16x16xf32>
    %c16 = arith.constant 16 : index
    %c0_1 = arith.constant 0 : index
    %1 = vector.load %arg1[%c16, %c0_1] : memref<50x16xf32, #tpu.memory_space<vmem>>, vector<16x16xf32>
    %c32 = arith.constant 32 : index
    %c0_2 = arith.constant 0 : index
    %2 = vector.load %arg1[%c32, %c0_2] : memref<50x16xf32, #tpu.memory_space<vmem>>, vector<16x16xf32>
    %c48 = arith.constant 48 : index
    %c0_3 = arith.constant 0 : index
    %3 = vector.load %arg1[%c48, %c0_3] : memref<50x16xf32, #tpu.memory_space<vmem>>, vector<1x16xf32>
    %c49 = arith.constant 49 : index
    %c0_4 = arith.constant 0 : index
    %4 = vector.load %arg1[%c49, %c0_4] : memref<50x16xf32, #tpu.memory_space<vmem>>, vector<1x16xf32>
    %c0_5 = arith.constant 0 : index
    %c0_6 = arith.constant 0 : index
    %5 = vector.load %arg2[%c0_5, %c0_6] : memref<17x128xf32, #tpu.memory_space<vmem>>, vector<16x128xf32>
    %c16_7 = arith.constant 16 : index
    %c0_8 = arith.constant 0 : index
    %6 = vector.load %arg2[%c16_7, %c0_8] : memref<17x128xf32, #tpu.memory_space<vmem>>, vector<1x128xf32>
    %7 = tpu.iota {dimensions = array<i32: 1>} : vector<8x16xi32>
    %8 = arith.sitofp %7 : vector<8x16xi32> to vector<8x16xf32>
    %9 = tpu.iota {dimensions = array<i32: 1>} : vector<1x128xi32>
    %c32_i32 = arith.constant 32 : i32
    %10 = vector.broadcast %c32_i32 : i32 to vector<1x128xi32>
    %11 = arith.cmpi eq, %9, %10 : vector<1x128xi32>
    %12 = arith.extui %11 : vector<1x128xi1> to vector<1x128xi32>
    %13 = arith.sitofp %12 : vector<1x128xi32> to vector<1x128xf32>
    %c33_i32 = arith.constant 33 : i32
    %14 = vector.broadcast %c33_i32 : i32 to vector<1x128xi32>
    %15 = arith.cmpi eq, %9, %14 : vector<1x128xi32>
    %16 = arith.extui %15 : vector<1x128xi1> to vector<1x128xi32>
    %17 = arith.sitofp %16 : vector<1x128xi32> to vector<1x128xf32>
    %c34_i32 = arith.constant 34 : i32
    %18 = vector.broadcast %c34_i32 : i32 to vector<1x128xi32>
    %19 = arith.cmpi eq, %9, %18 : vector<1x128xi32>
    %20 = arith.extui %19 : vector<1x128xi1> to vector<1x128xi32>
    %21 = arith.sitofp %20 : vector<1x128xi32> to vector<1x128xf32>
    %c0_9 = arith.constant 0 : index
    %c0_10 = arith.constant 0 : index
    %22 = vector.load %arg3[%c0_9, %c0_10] : memref<8x1xf32, #tpu.memory_space<vmem>>, vector<8x1xf32>
    %c0_i32 = arith.constant 0 : i32
    %23 = arith.index_cast %c0_i32 : i32 to index
    %c0_11 = arith.constant 0 : index
    %c0_12 = arith.constant 0 : index
    %24 = vector.load %arg4[%23, %c0_11, %c0_12] : memref<1x8x2xf32, #tpu.memory_space<vmem>>, vector<1x8x2xf32>
    %25 = vector.shape_cast %24 : vector<1x8x2xf32> to vector<8x2xf32>
    %26 = vector.extract_strided_slice %25 {offsets = [0, 0], sizes = [8, 1], strides = [1, 1]} : vector<8x2xf32> to vector<8x1xf32>
    %27 = vector.extract_strided_slice %25 {offsets = [0, 1], sizes = [8, 1], strides = [1, 1]} : vector<8x2xf32> to vector<8x1xf32>
    %28 = vector.broadcast %22 : vector<8x1xf32> to vector<8x16xf32>
    %29 = arith.cmpf oeq, %8, %28 : vector<8x16xf32>
    %30 = arith.extui %29 : vector<8x16xi1> to vector<8x16xi32>
    %31 = arith.sitofp %30 : vector<8x16xi32> to vector<8x16xf32>
    %cst = arith.constant dense<0.000000e+00> : vector<8x16xf32>
    %32 = tpu.matmul %31, %0, %cst {dimension_numbers = #tpu.dot_dimension_numbers<[1], [0], [0], [1], [0, 0, 1, 1], [], []>} : vector<8x16xf32>, vector<16x16xf32>, vector<8x16xf32> -> vector<8x16xf32>
    %cst_13 = arith.constant dense<0.000000e+00> : vector<8x16xf32>
    %33 = tpu.matmul %32, %1, %cst_13 {dimension_numbers = #tpu.dot_dimension_numbers<[1], [0], [0], [1], [0, 0, 1, 1], [], []>} : vector<8x16xf32>, vector<16x16xf32>, vector<8x16xf32> -> vector<8x16xf32>
    %34 = vector.broadcast %4 : vector<1x16xf32> to vector<8x16xf32>
    %35 = arith.mulf %34, %33 : vector<8x16xf32>
    %cst_14 = arith.constant dense<0.000000e+00> : vector<8x16xf32>
    %36 = tpu.matmul %35, %2, %cst_14 {dimension_numbers = #tpu.dot_dimension_numbers<[1], [0], [0], [1], [0, 0, 1, 1], [], []>} : vector<8x16xf32>, vector<16x16xf32>, vector<8x16xf32> -> vector<8x16xf32>
    %37 = vector.extract_strided_slice %36 {offsets = [0, 15], sizes = [8, 1], strides = [1, 1]} : vector<8x16xf32> to vector<8x1xf32>
    %38 = arith.mulf %26, %37 : vector<8x1xf32>
    %39 = vector.broadcast %38 : vector<8x1xf32> to vector<8x16xf32>
    %40 = arith.cmpf olt, %36, %39 : vector<8x16xf32>
    %41 = arith.extui %40 : vector<8x16xi1> to vector<8x16xi32>
    %42 = arith.sitofp %41 : vector<8x16xi32> to vector<8x16xf32>
    %cst_15 = arith.constant dense<0.000000e+00> : vector<8xf32>
    %43 = vector.multi_reduction <add>, %42, %cst_15 [1] : vector<8x16xf32> to vector<8xf32>
    %44 = vector.shape_cast %43 : vector<8xf32> to vector<8x1xf32>
    %45 = vector.broadcast %44 : vector<8x1xf32> to vector<8x16xf32>
    %46 = arith.cmpf oeq, %8, %45 : vector<8x16xf32>
    %47 = arith.extui %46 : vector<8x16xi1> to vector<8x16xi32>
    %48 = arith.sitofp %47 : vector<8x16xi32> to vector<8x16xf32>
    %49 = vector.broadcast %4 : vector<1x16xf32> to vector<8x16xf32>
    %50 = arith.mulf %48, %49 : vector<8x16xf32>
    %cst_16 = arith.constant dense<0.000000e+00> : vector<8xf32>
    %51 = vector.multi_reduction <add>, %50, %cst_16 [1] : vector<8x16xf32> to vector<8xf32>
    %52 = vector.shape_cast %51 : vector<8xf32> to vector<8x1xf32>
    %cst_17 = arith.constant 5.000000e-01 : f32
    %53 = vector.broadcast %cst_17 : f32 to vector<8x16xf32>
    %54 = arith.cmpf ogt, %32, %53 : vector<8x16xf32>
    %55 = arith.extui %54 : vector<8x16xi1> to vector<8x16xi32>
    %56 = arith.sitofp %55 : vector<8x16xi32> to vector<8x16xf32>
    %57 = vector.broadcast %3 : vector<1x16xf32> to vector<8x16xf32>
    %58 = vector.broadcast %44 : vector<8x1xf32> to vector<8x16xf32>
    %59 = arith.cmpf oeq, %57, %58 : vector<8x16xf32>
    %60 = arith.extui %59 : vector<8x16xi1> to vector<8x16xi32>
    %61 = arith.sitofp %60 : vector<8x16xi32> to vector<8x16xf32>
    %62 = arith.mulf %56, %61 : vector<8x16xf32>
    %cst_18 = arith.constant dense<0.000000e+00> : vector<8xf32>
    %63 = vector.multi_reduction <add>, %62, %cst_18 [1] : vector<8x16xf32> to vector<8xf32>
    %64 = vector.shape_cast %63 : vector<8xf32> to vector<8x1xf32>
    %cst_19 = arith.constant 5.000000e-01 : f32
    %65 = vector.broadcast %cst_19 : f32 to vector<8x1xf32>
    %66 = arith.cmpf ogt, %64, %65 : vector<8x1xf32>
    %67 = vector.shape_cast %66 : vector<8x1xi1> to vector<8x1xi1>
    %68 = vector.broadcast %67 : vector<8x1xi1> to vector<8x16xi1>
    %69 = arith.select %68, %62, %56 : vector<8x16xi1>, vector<8x16xf32>
    %cst_20 = arith.constant dense<0.000000e+00> : vector<8x16xf32>
    %70 = tpu.matmul %69, %2, %cst_20 {dimension_numbers = #tpu.dot_dimension_numbers<[1], [0], [0], [1], [0, 0, 1, 1], [], []>} : vector<8x16xf32>, vector<16x16xf32>, vector<8x16xf32> -> vector<8x16xf32>
    %71 = vector.extract_strided_slice %70 {offsets = [0, 15], sizes = [8, 1], strides = [1, 1]} : vector<8x16xf32> to vector<8x1xf32>
    %72 = arith.mulf %27, %71 : vector<8x1xf32>
    %73 = math.floor %72 : vector<8x1xf32>
    %cst_21 = arith.constant 1.000000e+00 : f32
    %74 = vector.broadcast %cst_21 : f32 to vector<8x1xf32>
    %75 = arith.addf %73, %74 : vector<8x1xf32>
    %76 = vector.broadcast %75 : vector<8x1xf32> to vector<8x16xf32>
    %77 = arith.cmpf oeq, %70, %76 : vector<8x16xf32>
    %cst_22 = arith.constant 5.000000e-01 : f32
    %78 = vector.broadcast %cst_22 : f32 to vector<8x16xf32>
    %79 = arith.cmpf ogt, %69, %78 : vector<8x16xf32>
    %80 = arith.andi %77, %79 : vector<8x16xi1>
    %81 = arith.extui %80 : vector<8x16xi1> to vector<8x16xi32>
    %82 = arith.sitofp %81 : vector<8x16xi32> to vector<8x16xf32>
    %83 = arith.mulf %8, %82 : vector<8x16xf32>
    %cst_23 = arith.constant dense<0.000000e+00> : vector<8xf32>
    %84 = vector.multi_reduction <add>, %83, %cst_23 [1] : vector<8x16xf32> to vector<8xf32>
    %85 = vector.shape_cast %84 : vector<8xf32> to vector<8x1xf32>
    %cst_24 = arith.constant dense<0.000000e+00> : vector<8x128xf32>
    %86 = tpu.matmul %48, %5, %cst_24 {dimension_numbers = #tpu.dot_dimension_numbers<[1], [0], [0], [1], [0, 0, 1, 1], [], []>} : vector<8x16xf32>, vector<16x128xf32>, vector<8x128xf32> -> vector<8x128xf32>
    %87 = vector.broadcast %6 : vector<1x128xf32> to vector<8x128xf32>
    %88 = arith.addf %86, %87 : vector<8x128xf32>
    %89 = vector.broadcast %52 : vector<8x1xf32> to vector<8x128xf32>
    %90 = vector.broadcast %13 : vector<1x128xf32> to vector<8x128xf32>
    %91 = arith.mulf %89, %90 : vector<8x128xf32>
    %92 = arith.addf %88, %91 : vector<8x128xf32>
    %93 = vector.broadcast %85 : vector<8x1xf32> to vector<8x128xf32>
    %94 = vector.broadcast %17 : vector<1x128xf32> to vector<8x128xf32>
    %95 = arith.mulf %93, %94 : vector<8x128xf32>
    %96 = arith.addf %92, %95 : vector<8x128xf32>
    %97 = vector.broadcast %44 : vector<8x1xf32> to vector<8x128xf32>
    %98 = vector.broadcast %21 : vector<1x128xf32> to vector<8x128xf32>
    %99 = arith.mulf %97, %98 : vector<8x128xf32>
    %100 = arith.addf %96, %99 : vector<8x128xf32>
    %101 = arith.index_cast %c0_i32 : i32 to index
    %c0_25 = arith.constant 0 : index
    %c0_26 = arith.constant 0 : index
    %102 = vector.load %arg5[%101, %c0_25, %c0_26] : memref<1x8x128xf32, #tpu.memory_space<vmem>>, vector<1x8x128xf32>
    %103 = vector.shape_cast %102 : vector<1x8x128xf32> to vector<8x128xf32>
    %104 = vector.shape_cast %100 : vector<8x128xf32> to vector<1x8x128xf32>
    tpu.vector_store %arg5[%101, %c0_25, %c0_26], %104 {strides = array<i32>} : memref<1x8x128xf32, #tpu.memory_space<vmem>>, vector<1x8x128xf32>,
    %c1_i32 = arith.constant 1 : i32
    return
  }
  func.func @transform_0(%arg0: i32) -> (i32, i32) {
    %c0_i32 = arith.constant 0 : i32
    %c0_i32_0 = arith.constant 0 : i32
    %c0_i32_1 = arith.constant 0 : i32
    return %c0_i32, %c0_i32_0 : i32, i32
  }
  func.func @transform_1(%arg0: i32) -> (i32, i32) {
    %c0_i32 = arith.constant 0 : i32
    %c0_i32_0 = arith.constant 0 : i32
    %c0_i32_1 = arith.constant 0 : i32
    return %c0_i32, %c0_i32_0 : i32, i32
  }
  func.func @transform_2(%arg0: i32) -> (i32, i32) {
    %c0_i32 = arith.constant 0 : i32
    %c0_i32_0 = arith.constant 0 : i32
    return %arg0, %c0_i32 : i32, i32
  }
  func.func @transform_3(%arg0: i32) -> (i32, i32, i32) {
    %c0_i32 = arith.constant 0 : i32
    %c0_i32_0 = arith.constant 0 : i32
    %c0_i32_1 = arith.constant 0 : i32
    return %c0_i32, %arg0, %c0_i32_0 : i32, i32, i32
  }
  func.func @transform_4(%arg0: i32) -> (i32, i32, i32) {
    %c0_i32 = arith.constant 0 : i32
    %c0_i32_0 = arith.constant 0 : i32
    %c0_i32_1 = arith.constant 0 : i32
    return %c0_i32, %arg0, %c0_i32_0 : i32, i32, i32
  }
}

</mosaic_0001>

<llo_original>
// kernel: _walk_call.1
$region0: #{_walk_call.1}
  #allocation0 [shape = 'u32[]', space=smem, size = 0x4, offset = 0x4, fixed_abs, tag = 'smem constant byte address 0x4 - core index']
  #allocation1 [shape = 'u32[72,128]{1,0:T(1,128)}', space=vmem, size = 0x9000, scoped, tag = 'internal scratch']
  %s0 = inlined_call_operand.vmem [shape: f32[50,16], index: 0, kind: input, shape index: {}]
  %s1 = inlined_call_operand.vmem [shape: f32[17,128], index: 1, kind: input, shape index: {}]
  %s2 = inlined_call_operand.vmem [shape: f32[8,1], index: 2, kind: input, shape index: {}]
  %s3 = inlined_call_operand.vmem [shape: f32[1,8,2], index: 3, kind: input, shape index: {}]
  %s4 = inlined_call_operand.vmem [shape: f32[1,8,128], index: 4, kind: output, shape index: {}]
  %s5 = sld [smem:[#allocation0]]
  $region26: #{_walk_call.1} parent=0
    _
  %s7 = ssub.s32 1, %s5
  %s8 = scalar_select 0, %s7, %s5
  // Predicated region
  $region2: #{_walk_call.1} parent=0 // pred_check
    _
  $region3: #{_walk_call.1} parent=0 // pred_check_branch
    %10 = sbr.rel (0) target = $region5
  $region4: #{_walk_call.1} parent=0 // pred_region
    _
  $region5: #{_walk_call.1} parent=0 // pred_fallthru
    _
  // Predicated region
  $region6: #{_walk_call.1} parent=0 // pred_check
    _
  $region7: #{_walk_call.1} parent=0 // pred_check_branch
    %12 = sbr.rel (0) target = $region9
  $region8: #{_walk_call.1} parent=0 // pred_region
    _
  $region9: #{_walk_call.1} parent=0 // pred_fallthru
    _
  // Predicated region
  $region10: #{_walk_call.1} parent=0 // pred_check
    _
  $region11: #{_walk_call.1} parent=0 // pred_check_branch
    %14 = sbr.rel (0) target = $region13
  $region12: #{_walk_call.1} parent=0 // pred_region
    _
  $region13: #{_walk_call.1} parent=0 // pred_fallthru
    _
  // Predicated region
  $region14: #{_walk_call.1} parent=0 // pred_check
    _
  $region15: #{_walk_call.1} parent=0 // pred_check_branch
    %16 = sbr.rel (0) target = $region17
  $region16: #{_walk_call.1} parent=0 // pred_region
    _
  $region17: #{_walk_call.1} parent=0 // pred_fallthru
    _
  %v17 = vld [vmem:[%s0] sm:$0xff]
  %v18 = vld [vmem:[%s0 + $0x8] sm:$0xff]
  %v19 = vld [vmem:[%s0 + $0x10] sm:$0xff]
  %v20 = vld [vmem:[%s0 + $0x18] sm:$0xff]
  %v21 = vld [vmem:[%s0 + $0x20] sm:$0xff]
  %v22 = vld [vmem:[%s0 + $0x28] sm:$0xff]
  %v23 = vld [vmem:[%s0 + $0x30] sm:$0x1]
  %v24 = vld [vmem:[%s0 + $0x31] sm:$0x1]
  %v25 = vld [vmem:[%s1] sm:$0xff]
  %v26 = vld [vmem:[%s1 + $0x8] sm:$0xff]
  %v27 = vld [vmem:[%s1 + $0x10] sm:$0x1]
  %v28 = vlaneseq
  %v29 = vand.u32 %v28, 127
  %v30 = vcvt.s32.f32 %v29
  %vm31 = vcmp.eq.s32.totalorder %v29, 32
  %v32 = vsel %vm31, 1, 0
  %v33 = vcvt.s32.f32 %v32
  %vm34 = vcmp.eq.s32.totalorder %v29, 33
  %v35 = vsel %vm34, 1, 0
  %v36 = vcvt.s32.f32 %v35
  %vm37 = vcmp.eq.s32.totalorder %v29, 34
  %v38 = vsel %vm37, 1, 0
  %v39 = vcvt.s32.f32 %v38
  %v40 = vld [vmem:[%s2] sm:$0xff]
  %v41 = vld [vmem:[%s3] sm:$0xff]
  %43 = vset.pattern.permute.xlu0 0
  %44 = vperm.xlu0 %43, %v40
  %v45 = vpop.permute.xlu0 %44
  %vm47 = vcmp.eq.f32.partialorder %v30, %v45
  %v48 = vsel %vm47, 1, 0
  %v49 = vcvt.s32.f32 %v48
  %vm50 = vcmask 130048
  %v52 = vsel %vm50, %v49, 0
  %54 = vmatpush.msra.mxu0 0.0
  %55 = vmatpush.msra.mxu0 0.0
  %56 = vmatpush.msra.mxu0 0.0
  %57 = vmatpush.msra.mxu0 0.0
  %58 = vmatpush.msra.mxu0 0.0
  %59 = vmatpush.msra.mxu0 0.0
  %60 = vmatpush.msra.mxu0 0.0
  %61 = vmatpush.msra.mxu0 0.0
  %62 = vmatpush.msra.mxu0 0.0
  %63 = vmatpush.msra.mxu0 0.0
  %64 = vmatpush.msra.mxu0 0.0
  %65 = vmatpush.msra.mxu0 0.0
  %66 = vmatpush.msra.mxu0 0.0
  %67 = vmatpush.msra.mxu0 0.0
  %68 = vmatpush.msra.mxu0 %v18
  %69 = vmatpush.msra.mxu0 %v17
  %70 = vmatmul.f32.gmra.mxu0 %v52
  %v71 = vpop.f32.mrf.mxu0
  %v72 = vadd.f32 0.0, %v71
  %73 = vdwg.mxu0
  %v75 = vsel %vm50, %v72, 0
  %77 = vmatpush.msra.mxu0 0.0
  %78 = vmatpush.msra.mxu0 0.0
  %79 = vmatpush.msra.mxu0 0.0
  %80 = vmatpush.msra.mxu0 0.0
  %81 = vmatpush.msra.mxu0 0.0
  %82 = vmatpush.msra.mxu0 0.0
  %83 = vmatpush.msra.mxu0 0.0
  %84 = vmatpush.msra.mxu0 0.0
  %85 = vmatpush.msra.mxu0 0.0
  %86 = vmatpush.msra.mxu0 0.0
  %87 = vmatpush.msra.mxu0 0.0
  %88 = vmatpush.msra.mxu0 0.0
  %89 = vmatpush.msra.mxu0 0.0
  %90 = vmatpush.msra.mxu0 0.0
  %91 = vmatpush.msra.mxu0 %v20
  %92 = vmatpush.msra.mxu0 %v19
  %93 = vmatmul.f32.gmra.mxu0 %v75
  %v94 = vpop.f32.mrf.mxu0
  %v95 = vadd.f32 0.0, %v94
  %96 = vdwg.mxu0
  %v97 = vperm.slane %v24, 0
  %v98 = vmul.f32 %v97, %v95
  %v100 = vsel %vm50, %v98, 0
  %102 = vmatpush.msra.mxu0 0.0
  %103 = vmatpush.msra.mxu0 0.0
  %104 = vmatpush.msra.mxu0 0.0
  %105 = vmatpush.msra.mxu0 0.0
  %106 = vmatpush.msra.mxu0 0.0
  %107 = vmatpush.msra.mxu0 0.0
  %108 = vmatpush.msra.mxu0 0.0
  %109 = vmatpush.msra.mxu0 0.0
  %110 = vmatpush.msra.mxu0 0.0
  %111 = vmatpush.msra.mxu0 0.0
  %112 = vmatpush.msra.mxu0 0.0
  %113 = vmatpush.msra.mxu0 0.0
  %114 = vmatpush.msra.mxu0 0.0
  %115 = vmatpush.msra.mxu0 0.0
  %116 = vmatpush.msra.mxu0 %v22
  %117 = vmatpush.msra.mxu0 %v21
  %118 = vmatmul.f32.gmra.mxu0 %v100
  %v119 = vpop.f32.mrf.mxu0
  %v120 = vadd.f32 0.0, %v119
  %121 = vdwg.mxu0
  %123 = vrot.lane.b32.xlu0 %v120, 113
  %v124 = vpop.permute.xlu0 %123
  %v126 = vmul.f32 %v41, %v124
  %128 = vset.pattern.permute.xlu0 0
  %129 = vperm.xlu0 %128, %v126
  %v130 = vpop.permute.xlu0 %129
  %vm132 = vcmp.lt.f32.partialorder %v120, %v130
  %v133 = vsel %vm132, 1, 0
  %v134 = vcvt.s32.f32 %v133
  %v135 = vsel %vm50, %v134, 0.0
  %136 = vadd.xlane.f32.xlu0 %v135
  %v137 = vpop.xlane.xlu0 %136
  %vm138 = vcmp.eq.f32.partialorder %v30, %v137
  %v139 = vsel %vm138, 1, 0
  %v140 = vcvt.s32.f32 %v139
  %v141 = vmul.f32 %v140, %v97
  %v142 = vsel %vm50, %v141, 0.0
  %143 = vadd.xlane.f32.xlu0 %v142
  %v144 = vpop.xlane.xlu0 %143
  %vm145 = vcmp.gt.f32.partialorder %v72, 0.5
  %v146 = vsel %vm145, 1, 0
  %v147 = vcvt.s32.f32 %v146
  %v148 = vperm.slane %v23, 0
  %vm149 = vcmp.eq.f32.partialorder %v148, %v137
  %v150 = vsel %vm149, 1, 0
  %v151 = vcvt.s32.f32 %v150
  %v152 = vmul.f32 %v147, %v151
  %v153 = vsel %vm50, %v152, 0.0
  %154 = vadd.xlane.f32.xlu0 %v153
  %v155 = vpop.xlane.xlu0 %154
  %vm156 = vcmp.gt.f32.partialorder %v155, 0.5
  %v157 = vsel %vm156, 1, 0
  %vm158 = vcmp.eq.s32.totalorder %v157, 1
  %v159 = vsel %vm158, %v152, %v147
  %v161 = vsel %vm50, %v159, 0
  %163 = vmatpush.msra.mxu0 0.0
  %164 = vmatpush.msra.mxu0 0.0
  %165 = vmatpush.msra.mxu0 0.0
  %166 = vmatpush.msra.mxu0 0.0
  %167 = vmatpush.msra.mxu0 0.0
  %168 = vmatpush.msra.mxu0 0.0
  %169 = vmatpush.msra.mxu0 0.0
  %170 = vmatpush.msra.mxu0 0.0
  %171 = vmatpush.msra.mxu0 0.0
  %172 = vmatpush.msra.mxu0 0.0
  %173 = vmatpush.msra.mxu0 0.0
  %174 = vmatpush.msra.mxu0 0.0
  %175 = vmatpush.msra.mxu0 0.0
  %176 = vmatpush.msra.mxu0 0.0
  %177 = vmatpush.msra.mxu0 %v22
  %178 = vmatpush.msra.mxu0 %v21
  %179 = vmatmul.f32.gmra.mxu0 %v161
  %v180 = vpop.f32.mrf.mxu0
  %v181 = vadd.f32 0.0, %v180
  %182 = vdwg.mxu0
  %184 = vrot.lane.b32.xlu0 %v181, 114
  %v185 = vpop.permute.xlu0 %184
  %v187 = vmul.f32 %v41, %v185
  %v188 = vfloor.f32 %v187
  %v189 = vadd.f32 %v188, 1.0
  %191 = vset.pattern.permute.xlu0 1
  %192 = vperm.xlu0 %191, %v189
  %v193 = vpop.permute.xlu0 %192
  %vm195 = vcmp.eq.f32.partialorder %v181, %v193
  %vm196 = vcmp.gt.f32.partialorder %v159, 0.5
  %vm197 = vmand %vm195, %vm196
  %v198 = vsel %vm197, 1, 0
  %v199 = vcvt.s32.f32 %v198
  %v200 = vmul.f32 %v30, %v199
  %v201 = vsel %vm50, %v200, 0.0
  %202 = vadd.xlane.f32.xlu0 %v201
  %v203 = vpop.xlane.xlu0 %202
  %v204 = vperm.slane %v27, 0
  %v206 = vsel %vm50, %v140, 0
  %208 = vmatpush.msra.mxu0 0.0
  %209 = vmatpush.msra.mxu0 0.0
  %210 = vmatpush.msra.mxu0 0.0
  %211 = vmatpush.msra.mxu0 0.0
  %212 = vmatpush.msra.mxu0 0.0
  %213 = vmatpush.msra.mxu0 0.0
  %214 = vmatpush.msra.mxu0 0.0
  %215 = vmatpush.msra.mxu0 0.0
  %216 = vmatpush.msra.mxu0 0.0
  %217 = vmatpush.msra.mxu0 0.0
  %218 = vmatpush.msra.mxu0 0.0
  %219 = vmatpush.msra.mxu0 0.0
  %220 = vmatpush.msra.mxu0 0.0
  %221 = vmatpush.msra.mxu0 0.0
  %222 = vmatpush.msra.mxu0 %v26
  %223 = vmatpush.msra.mxu0 %v25
  %224 = vmatmul.f32.gmra.mxu0 %v206
  %v225 = vpop.f32.mrf.mxu0
  %v226 = vadd.f32 %v204, %v225
  %227 = vdwg.mxu0
  %v228 = vmul.f32 %v144, %v33
  %v229 = vadd.f32 %v226, %v228
  %v230 = vmul.f32 %v203, %v36
  %v231 = vadd.f32 %v229, %v230
  %v232 = vmul.f32 %v137, %v39
  %v233 = vadd.f32 %v231, %v232
  %234 = vst [vmem:[%s4] sm:$0xff] %v233
  // Predicated region
  $region18: #{_walk_call.1} parent=0 // pred_check
    _
  $region19: #{_walk_call.1} parent=0 // pred_check_branch
    %236 = sbr.rel (0) target = $region21
  $region20: #{_walk_call.1} parent=0 // pred_region
    _
  $region21: #{_walk_call.1} parent=0 // pred_fallthru
    _
  // Predicated region
  $region22: #{_walk_call.1} parent=0 // pred_check
    _
  $region23: #{_walk_call.1} parent=0 // pred_check_branch
    %238 = sbr.rel (0) target = $region25
  $region24: #{_walk_call.1} parent=0 // pred_region
    _
  $region25: #{_walk_call.1} parent=0 // pred_fallthru
    _

</llo_original>
